<compile_context>
chip_gen: v5e
topology: v5e:2x2
jax: 0.10.0
libtpu: 0.0.40
codegen_flags: <defaults>
</compile_context>

<pallas_src>
import jax
import jax.numpy as jnp
from jax.experimental import pallas as pl
from jax.experimental.pallas import tpu as pltpu

LANE_C = 512      # lane-dense last dim (multiple of 128)
MAX_TILE_R = 512  # row tile -> 512x512 f32 block = 1 MiB per input


def _round_up(x, m):
    return (x + m - 1) // m * m


def _dice_partials_kernel(scores_ref, targets_ref, out_ref):
    """Emit per-chunk vector partial sums: out = [sum(p), sum(t), sum(p*t)] folded to (8,128)."""
    s = scores_ref[...].astype(jnp.float32)
    t = targets_ref[...].astype(jnp.float32)
    p = jax.nn.sigmoid(s)

    r, c = s.shape

    def fold(x):
        # Group rows by sublane blocks of 8 and sum over the major axis:
        # pure elementwise vreg adds (VALU), no cross-lane (XLU) reduction.
        v = jnp.sum(x.reshape(r // 8, 8, c), axis=0)          # (8, c)
        acc = v[:, 0:128]
        for j in range(1, c // 128):                           # fold lane groups
            acc = acc + v[:, j * 128:(j + 1) * 128]
        return acc                                             # (8, 128)

    partial = jnp.stack([fold(p), fold(t), fold(p * t)], axis=0)   # (3, 8, 128)
    out_ref[...] = partial.reshape((1, 3, 8, 128))


def unbiased_dice_loss(scores_matrix, targets_matrix,
                       smooth_factor=0.5, fg_weight=1.0):
    assert scores_matrix.shape == targets_matrix.shape
    assert scores_matrix.ndim == 3, "expects 3D inputs (B, H, W)"

    n = int(scores_matrix.size)
    c = LANE_C
    m_raw = pl.cdiv(n, c)
    if m_raw <= MAX_TILE_R:
        tile_r = _round_up(m_raw, 8)          # single block covering everything
        m = tile_r
    else:
        tile_r = MAX_TILE_R
        m = _round_up(m_raw, tile_r)
    grid_r = m // tile_r
    pad = m * c - n

    s_flat = scores_matrix.reshape(-1)
    t_flat = targets_matrix.reshape(-1)
    if pad:
        # Zero padding contributes exactly sigmoid(0)=0.5 per element to sum(p),
        # 0 to sum(t) and sum(p*t) -> corrected analytically below.  For
        # slab-aligned inputs this branch (and its copy) is skipped entirely.
        s_flat = jnp.pad(s_flat, (0, pad))
        t_flat = jnp.pad(t_flat, (0, pad))
    s2 = s_flat.reshape(m, c)
    t2 = t_flat.reshape(m, c)

    partials = pl.pallas_call(
        _dice_partials_kernel,
        out_shape=jax.ShapeDtypeStruct((grid_r, 3, 8, 128), jnp.float32),
        grid_spec=pltpu.PrefetchScalarGridSpec(
            num_scalar_prefetch=0,
            grid=(grid_r,),
            in_specs=[
                pl.BlockSpec((tile_r, c), lambda i: (i, 0)),
                pl.BlockSpec((tile_r, c), lambda i: (i, 0)),
            ],
            out_specs=pl.BlockSpec((1, 3, 8, 128), lambda i: (i, 0, 0, 0)),
        ),
        compiler_params=pltpu.CompilerParams(
            dimension_semantics=("parallel",)),   # independent chunks -> 2 TCs on v7x
    )(s2, t2)

    # Finish the (tiny) scalar dice math in plain JAX.
    sums = jnp.sum(partials, axis=(0, 2, 3))      # (3,)
    sp = sums[0] - 0.5 * pad                      # remove padded sigmoid(0) contributions
    st = sums[1]
    spt = sums[2]

    n_f = float(n)
    smooth = float(smooth_factor)
    half_c = 0.5 * smooth * n_f                   # N * smooth/2 (added per element in torch)
    full_c = smooth * n_f                         # N * smooth

    fg_overlap = 2.0 * (spt + half_c) / (sp + st + full_c)
    bg_inter = n_f - sp - st + spt                # sum((1-p)*(1-t))
    bg_union = 2.0 * n_f - sp - st                # sum((1-p)+(1-t))
    bg_overlap = 2.0 * (bg_inter + half_c) / (bg_union + full_c)
    return 2.0 - float(fg_weight) * fg_overlap - bg_overlap


if __name__ == "__main__":
    key = jax.random.PRNGKey(0)
    k1, k2 = jax.random.split(key)

    # Small 3D shapes consistent with the module's "3D matrices" assumption.
    B, H, W = 2, 16, 16
    scores = jax.random.normal(k1, (B, H, W), dtype=jnp.float32)
    targets = (jax.random.uniform(k2, (B, H, W)) > 0.5).astype(jnp.float32)

    loss = unbiased_dice_loss(scores, targets, smooth_factor=0.5, fg_weight=1.0)
    loss = jax.block_until_ready(loss)

    # Pure-JAX reference replicating the torch forward exactly.
    smooth = 0.5
    p = jax.nn.sigmoid(scores)
    fg = 2.0 * (p * targets + smooth / 2).sum() / (p + targets + smooth).sum()
    bgp, bgt = 1.0 - p, 1.0 - targets
    bg = 2.0 * (bgp * bgt + smooth / 2).sum() / (bgp + bgt + smooth).sum()
    ref = 2.0 - 1.0 * fg - bg

    assert jnp.allclose(loss, ref, atol=1e-5, rtol=1e-5), (loss, ref)
    print("KERNEL_OK")
</pallas_src>

<mosaic_0001>
module attributes {stable_mosaic.version = 11 : i64} {
  func.func @_dice_partials_kernel(%arg0: i32, %arg1: memref<8x512xf32, #tpu.memory_space<vmem>>, %arg2: memref<8x512xf32, #tpu.memory_space<vmem>>, %arg3: memref<1x3x8x128xf32, #tpu.memory_space<vmem>>) attributes {dimension_semantics = [#tpu.dimension_semantics<parallel>], iteration_bounds = array<i64: 1>, scalar_prefetch = 0 : i64, scratch_operands = 0 : i64, tpu.core_type = #tpu.core_type<tc>, window_params = [{transform_indices = @transform_0, window_bounds = array<i64: 8, 512>}, {transform_indices = @transform_1, window_bounds = array<i64: 8, 512>}, {transform_indices = @transform_2, window_bounds = array<i64: 1, 3, 8, 128>}]} {
    %c0 = arith.constant 0 : index
    %c0_0 = arith.constant 0 : index
    %0 = vector.load %arg1[%c0, %c0_0] : memref<8x512xf32, #tpu.memory_space<vmem>>, vector<8x512xf32>
    %c0_1 = arith.constant 0 : index
    %c0_2 = arith.constant 0 : index
    %1 = vector.load %arg2[%c0_1, %c0_2] : memref<8x512xf32, #tpu.memory_space<vmem>>, vector<8x512xf32>
    %2 = arith.negf %0 : vector<8x512xf32>
    %3 = math.exp %2 : vector<8x512xf32>
    %cst = arith.constant 1.000000e+00 : f32
    %4 = vector.broadcast %cst : f32 to vector<8x512xf32>
    %5 = arith.addf %4, %3 : vector<8x512xf32>
    %6 = arith.divf %4, %5 : vector<8x512xf32>
    %7 = vector.shape_cast %6 : vector<8x512xf32> to vector<1x8x512xf32>
    %cst_3 = arith.constant dense<0.000000e+00> : vector<8x512xf32>
    %8 = vector.multi_reduction <add>, %7, %cst_3 [0] : vector<1x8x512xf32> to vector<8x512xf32>
    %9 = vector.extract_strided_slice %8 {offsets = [0, 0], sizes = [8, 128], strides = [1, 1]} : vector<8x512xf32> to vector<8x128xf32>
    %10 = vector.extract_strided_slice %8 {offsets = [0, 128], sizes = [8, 128], strides = [1, 1]} : vector<8x512xf32> to vector<8x128xf32>
    %11 = arith.addf %9, %10 : vector<8x128xf32>
    %12 = vector.extract_strided_slice %8 {offsets = [0, 256], sizes = [8, 128], strides = [1, 1]} : vector<8x512xf32> to vector<8x128xf32>
    %13 = arith.addf %11, %12 : vector<8x128xf32>
    %14 = vector.extract_strided_slice %8 {offsets = [0, 384], sizes = [8, 128], strides = [1, 1]} : vector<8x512xf32> to vector<8x128xf32>
    %15 = arith.addf %13, %14 : vector<8x128xf32>
    %16 = vector.shape_cast %1 : vector<8x512xf32> to vector<1x8x512xf32>
    %cst_4 = arith.constant dense<0.000000e+00> : vector<8x512xf32>
    %17 = vector.multi_reduction <add>, %16, %cst_4 [0] : vector<1x8x512xf32> to vector<8x512xf32>
    %18 = vector.extract_strided_slice %17 {offsets = [0, 0], sizes = [8, 128], strides = [1, 1]} : vector<8x512xf32> to vector<8x128xf32>
    %19 = vector.extract_strided_slice %17 {offsets = [0, 128], sizes = [8, 128], strides = [1, 1]} : vector<8x512xf32> to vector<8x128xf32>
    %20 = arith.addf %18, %19 : vector<8x128xf32>
    %21 = vector.extract_strided_slice %17 {offsets = [0, 256], sizes = [8, 128], strides = [1, 1]} : vector<8x512xf32> to vector<8x128xf32>
    %22 = arith.addf %20, %21 : vector<8x128xf32>
    %23 = vector.extract_strided_slice %17 {offsets = [0, 384], sizes = [8, 128], strides = [1, 1]} : vector<8x512xf32> to vector<8x128xf32>
    %24 = arith.addf %22, %23 : vector<8x128xf32>
    %25 = arith.mulf %6, %1 : vector<8x512xf32>
    %26 = vector.shape_cast %25 : vector<8x512xf32> to vector<1x8x512xf32>
    %cst_5 = arith.constant dense<0.000000e+00> : vector<8x512xf32>
    %27 = vector.multi_reduction <add>, %26, %cst_5 [0] : vector<1x8x512xf32> to vector<8x512xf32>
    %28 = vector.extract_strided_slice %27 {offsets = [0, 0], sizes = [8, 128], strides = [1, 1]} : vector<8x512xf32> to vector<8x128xf32>
    %29 = vector.extract_strided_slice %27 {offsets = [0, 128], sizes = [8, 128], strides = [1, 1]} : vector<8x512xf32> to vector<8x128xf32>
    %30 = arith.addf %28, %29 : vector<8x128xf32>
    %31 = vector.extract_strided_slice %27 {offsets = [0, 256], sizes = [8, 128], strides = [1, 1]} : vector<8x512xf32> to vector<8x128xf32>
    %32 = arith.addf %30, %31 : vector<8x128xf32>
    %33 = vector.extract_strided_slice %27 {offsets = [0, 384], sizes = [8, 128], strides = [1, 1]} : vector<8x512xf32> to vector<8x128xf32>
    %34 = arith.addf %32, %33 : vector<8x128xf32>
    %35 = vector.shape_cast %15 : vector<8x128xf32> to vector<1x8x128xf32>
    %36 = vector.shape_cast %24 : vector<8x128xf32> to vector<1x8x128xf32>
    %37 = vector.shape_cast %34 : vector<8x128xf32> to vector<1x8x128xf32>
    %38 = tpu.concatenate %35, %36, %37 in 0 : vector<1x8x128xf32>, vector<1x8x128xf32>, vector<1x8x128xf32> -> vector<3x8x128xf32>
    %39 = vector.shape_cast %38 : vector<3x8x128xf32> to vector<1x3x8x128xf32>
    %c0_6 = arith.constant 0 : index
    %c0_7 = arith.constant 0 : index
    %c0_8 = arith.constant 0 : index
    %c0_9 = arith.constant 0 : index
    %40 = vector.load %arg3[%c0_6, %c0_7, %c0_8, %c0_9] : memref<1x3x8x128xf32, #tpu.memory_space<vmem>>, vector<1x3x8x128xf32>
    tpu.vector_store %arg3[%c0_6, %c0_7, %c0_8, %c0_9], %39 {strides = array<i32>} : memref<1x3x8x128xf32, #tpu.memory_space<vmem>>, vector<1x3x8x128xf32>,
    return
  }
  func.func @transform_0(%arg0: i32) -> (i32, i32) {
    %c0_i32 = arith.constant 0 : i32
    %c0_i32_0 = arith.constant 0 : i32
    return %arg0, %c0_i32 : i32, i32
  }
  func.func @transform_1(%arg0: i32) -> (i32, i32) {
    %c0_i32 = arith.constant 0 : i32
    %c0_i32_0 = arith.constant 0 : i32
    return %arg0, %c0_i32 : i32, i32
  }
  func.func @transform_2(%arg0: i32) -> (i32, i32, i32, i32) {
    %c0_i32 = arith.constant 0 : i32
    %c0_i32_0 = arith.constant 0 : i32
    %c0_i32_1 = arith.constant 0 : i32
    %c0_i32_2 = arith.constant 0 : i32
    return %arg0, %c0_i32, %c0_i32_0, %c0_i32_1 : i32, i32, i32, i32
  }
}

</mosaic_0001>

<llo_original>
// kernel: tpu_custom_call.1
$region0: #{tpu_custom_call.1}
  #allocation0 [shape = 'u32[]', space=smem, size = 0x4, offset = 0x4, fixed_abs, tag = 'smem constant byte address 0x4 - core index']
  #allocation1 [shape = 'u32[72,128]{1,0:T(1,128)}', space=vmem, size = 0x9000, scoped, tag = 'internal scratch']
  %s0 = inlined_call_operand.hbm [shape: f32[8,512], index: 0, kind: input, shape index: {}]
  %s1 = inlined_call_operand.hbm [shape: f32[8,512], index: 1, kind: input, shape index: {}]
  %s2 = inlined_call_operand.hbm [shape: f32[1,3,8,128], index: 2, kind: output, shape index: {}]
  %s3 = sld [smem:[#allocation0]]
  $region26: #{tpu_custom_call.1} parent=0
    _
  %s5 = ssub.s32 1, %s3
  %s6 = scalar_select 0, %s5, %s3
  $region1: #{tpu_custom_call.1} parent=0
    #allocation2 [shape = 'u8[16384]{0}', space=vmem, size = 0x4000, scoped, tag = 'input window, operand 0, single buffered']
    #allocation3 [shape = 's32[1]{0}', space=sflag, size = 0x4, scoped, tag = 'scoped memory for tpu_custom_call.1']
    #allocation4 [shape = 's32[1]{0}', space=sflag, size = 0x4, scoped, tag = 'scoped memory for tpu_custom_call.1']
    #allocation5 [shape = 'u8[16384]{0}', space=vmem, size = 0x4000, scoped, tag = 'input window, operand 1, single buffered']
    #allocation6 [shape = 's32[1]{0}', space=sflag, size = 0x4, scoped, tag = 'scoped memory for tpu_custom_call.1']
    #allocation7 [shape = 'u8[12288]{0}', space=vmem, size = 0x3000, scoped, tag = 'output window, operand 0, single buffered']
    %7 = vsyncpa [#allocation3], 0
    %8 = vsyncpa [#allocation6], 0
    %9 = vsyncpa [#allocation4], 0
    // Predicated region
    $region2: #{tpu_custom_call.1} parent=1 // pred_check
      _
    $region3: #{tpu_custom_call.1} parent=1 // pred_check_branch
      %11 = sbr.rel (0) target = $region5
    $region4: #{tpu_custom_call.1} parent=1 // pred_region
      %13 = vsyncadd [#allocation3], 0
      %s15 = sshll.u32 %s0, 4
      %s16 = int_to_ptr.hbm [resolvable:$true] %s15
      %s17 = sshll.u32 [#allocation2], 4
      %s18 = int_to_ptr.vmem [resolvable:$true] %s17
      %20 = dma.hbm_to_vmem [thread:$0]  %s16, 512, %s18, [#allocation3]
    $region5: #{tpu_custom_call.1} parent=1 // pred_fallthru
      _
    // Predicated region
    $region6: #{tpu_custom_call.1} parent=1 // pred_check
      _
    $region7: #{tpu_custom_call.1} parent=1 // pred_check_branch
      %22 = sbr.rel (0) target = $region9
    $region8: #{tpu_custom_call.1} parent=1 // pred_region
      %24 = vsyncadd [#allocation6], 0
      %s26 = sshll.u32 %s1, 4
      %s27 = int_to_ptr.hbm [resolvable:$true] %s26
      %s28 = sshll.u32 [#allocation5], 4
      %s29 = int_to_ptr.vmem [resolvable:$true] %s28
      %31 = dma.hbm_to_vmem [thread:$0]  %s27, 512, %s29, [#allocation6]
    $region9: #{tpu_custom_call.1} parent=1 // pred_fallthru
      _
    // Predicated region
    $region10: #{tpu_custom_call.1} parent=1 // pred_check
      _
    $region11: #{tpu_custom_call.1} parent=1 // pred_check_branch
      %33 = sbr.rel (0) target = $region13
    $region12: #{tpu_custom_call.1} parent=1 // pred_region
      %35 = dma.done [#allocation3], 512
    $region13: #{tpu_custom_call.1} parent=1 // pred_fallthru
      _
    // Predicated region
    $region14: #{tpu_custom_call.1} parent=1 // pred_check
      _
    $region15: #{tpu_custom_call.1} parent=1 // pred_check_branch
      %37 = sbr.rel (0) target = $region17
    $region16: #{tpu_custom_call.1} parent=1 // pred_region
      %39 = dma.done [#allocation6], 512
    $region17: #{tpu_custom_call.1} parent=1 // pred_fallthru
      _
    %v40 = vld [vmem:[#allocation2] sm:$0xff]
    %v41 = vld [vmem:[#allocation2 + $0x8] sm:$0xff]
    %v42 = vld [vmem:[#allocation2 + $0x10] sm:$0xff]
    %v43 = vld [vmem:[#allocation2 + $0x18] sm:$0xff]
    %v44 = vld [vmem:[#allocation5] sm:$0xff]
    %v45 = vld [vmem:[#allocation5 + $0x8] sm:$0xff]
    %v46 = vld [vmem:[#allocation5 + $0x10] sm:$0xff]
    %v47 = vld [vmem:[#allocation5 + $0x18] sm:$0xff]
    %v48 = vxor.u32 %v40, 2147483648
    %v49 = vxor.u32 %v41, 2147483648
    %v50 = vxor.u32 %v42, 2147483648
    %v51 = vxor.u32 %v43, 2147483648
    %v52 = vmul.f32 %v48, 1.442695
    %v53 = vpow.pop %v52
    %v54 = vmul.f32 %v49, 1.442695
    %v55 = vpow.pop %v54
    %v56 = vmul.f32 %v50, 1.442695
    %v57 = vpow.pop %v56
    %v58 = vmul.f32 %v51, 1.442695
    %v59 = vpow.pop %v58
    %v60 = vadd.f32 %v53, 1.0
    %v61 = vadd.f32 %v55, 1.0
    %v62 = vadd.f32 %v57, 1.0
    %v63 = vadd.f32 %v59, 1.0
    %v64 = vrcp.pop %v60
    %v65 = vmul.f32 %v60, %v64
    %v66 = vsub.f32 1.0, %v65
    %v67 = vmul.f32 %v64, %v66
    %v68 = vadd.f32 %v64, %v67
    %vm69 = vweird.f32 %v60
    %vm70 = vweird.f32 %v64
    %vm71 = vmor %vm69, %vm70
    %v72 = vsel %vm71, %v64, %v68
    %v73 = vand.u32 2147483647, %v60
    %vm74 = vcmp.eq.f32.partialorder %v73, 8.507059e+37
    %v75 = vand.u32 %v60, 2147483648
    %v76 = vor.u32 1.1754944e-38, %v75
    %v77 = vsel %vm74, %v76, %v72
    %v78 = vmul.f32 1.0, %v77
    %v79 = vrcp.pop %v61
    %v80 = vmul.f32 %v61, %v79
    %v81 = vsub.f32 1.0, %v80
    %v82 = vmul.f32 %v79, %v81
    %v83 = vadd.f32 %v79, %v82
    %vm84 = vweird.f32 %v61
    %vm85 = vweird.f32 %v79
    %vm86 = vmor %vm84, %vm85
    %v87 = vsel %vm86, %v79, %v83
    %v88 = vand.u32 2147483647, %v61
    %vm89 = vcmp.eq.f32.partialorder %v88, 8.507059e+37
    %v90 = vand.u32 %v61, 2147483648
    %v91 = vor.u32 1.1754944e-38, %v90
    %v92 = vsel %vm89, %v91, %v87
    %v93 = vmul.f32 1.0, %v92
    %v94 = vrcp.pop %v62
    %v95 = vmul.f32 %v62, %v94
    %v96 = vsub.f32 1.0, %v95
    %v97 = vmul.f32 %v94, %v96
    %v98 = vadd.f32 %v94, %v97
    %vm99 = vweird.f32 %v62
    %vm100 = vweird.f32 %v94
    %vm101 = vmor %vm99, %vm100
    %v102 = vsel %vm101, %v94, %v98
    %v103 = vand.u32 2147483647, %v62
    %vm104 = vcmp.eq.f32.partialorder %v103, 8.507059e+37
    %v105 = vand.u32 %v62, 2147483648
    %v106 = vor.u32 1.1754944e-38, %v105
    %v107 = vsel %vm104, %v106, %v102
    %v108 = vmul.f32 1.0, %v107
    %v109 = vrcp.pop %v63
    %v110 = vmul.f32 %v63, %v109
    %v111 = vsub.f32 1.0, %v110
    %v112 = vmul.f32 %v109, %v111
    %v113 = vadd.f32 %v109, %v112
    %vm114 = vweird.f32 %v63
    %vm115 = vweird.f32 %v109
    %vm116 = vmor %vm114, %vm115
    %v117 = vsel %vm116, %v109, %v113
    %v118 = vand.u32 2147483647, %v63
    %vm119 = vcmp.eq.f32.partialorder %v118, 8.507059e+37
    %v120 = vand.u32 %v63, 2147483648
    %v121 = vor.u32 1.1754944e-38, %v120
    %v122 = vsel %vm119, %v121, %v117
    %v123 = vmul.f32 1.0, %v122
    %v124 = vadd.f32 %v78, 0.0
    %v125 = vadd.f32 %v93, 0.0
    %v126 = vadd.f32 %v108, 0.0
    %v127 = vadd.f32 %v123, 0.0
    %v128 = vadd.f32 %v124, %v125
    %v129 = vadd.f32 %v128, %v126
    %v130 = vadd.f32 %v129, %v127
    %v131 = vadd.f32 %v44, 0.0
    %v132 = vadd.f32 %v45, 0.0
    %v133 = vadd.f32 %v46, 0.0
    %v134 = vadd.f32 %v47, 0.0
    %v135 = vadd.f32 %v131, %v132
    %v136 = vadd.f32 %v135, %v133
    %v137 = vadd.f32 %v136, %v134
    %v138 = vmul.f32 %v78, %v44
    %v139 = vmul.f32 %v93, %v45
    %v140 = vmul.f32 %v108, %v46
    %v141 = vmul.f32 %v123, %v47
    %v142 = vadd.f32 %v138, 0.0
    %v143 = vadd.f32 %v139, 0.0
    %v144 = vadd.f32 %v140, 0.0
    %v145 = vadd.f32 %v141, 0.0
    %v146 = vadd.f32 %v142, %v143
    %v147 = vadd.f32 %v146, %v144
    %v148 = vadd.f32 %v147, %v145
    %149 = vst [vmem:[#allocation7] sm:$0xff] %v130
    %150 = vst [vmem:[#allocation7 + $0x8] sm:$0xff] %v137
    %151 = vst [vmem:[#allocation7 + $0x10] sm:$0xff] %v148
    // Predicated region
    $region18: #{tpu_custom_call.1} parent=1 // pred_check
      _
    $region19: #{tpu_custom_call.1} parent=1 // pred_check_branch
      %153 = sbr.rel (0) target = $region21
    $region20: #{tpu_custom_call.1} parent=1 // pred_region
      %155 = vsyncadd [#allocation4], 0
      %s156 = sshll.u32 [#allocation7], 4
      %s157 = int_to_ptr.vmem [resolvable:$true] %s156
      %s158 = sshll.u32 %s2, 4
      %s159 = int_to_ptr.hbm [resolvable:$true] %s158
      %164 = dma.vmem_to_hbm [thread:$0]  %s157, 384, %s159, [#allocation4], 128, 128, 8
    $region21: #{tpu_custom_call.1} parent=1 // pred_fallthru
      _
    // Predicated region
    $region22: #{tpu_custom_call.1} parent=1 // pred_check
      _
    $region23: #{tpu_custom_call.1} parent=1 // pred_check_branch
      %166 = sbr.rel (0) target = $region25
    $region24: #{tpu_custom_call.1} parent=1 // pred_region
      %168 = dma.done [#allocation4], 384
    $region25: #{tpu_custom_call.1} parent=1 // pred_fallthru
      _
    %169 = vsyncpa [#allocation3], 1
    %170 = vsyncpa [#allocation6], 1
    %171 = vsyncpa [#allocation4], 1

</llo_original>
